<compile_context>
chip_gen: v5e
topology: v5e:2x2
jax: 0.10.0
libtpu: 0.0.40
codegen_flags: <defaults>
</compile_context>

<pallas_src>
import functools

import jax
import jax.numpy as jnp
from jax import lax
from jax.experimental import pallas as pl
from jax.experimental.pallas import tpu as pltpu


# -----------------------------------------------------------------------------
# Sizing helpers
# -----------------------------------------------------------------------------
def _vmem_budget_bytes():
    """Generation-aware VMEM budget, leaving headroom for Mosaic scratch."""
    cap = 128 * 1024 * 1024
    try:
        cap = int(pltpu.get_tpu_info().vmem_capacity_bytes)
    except Exception:
        pass  # interpret mode / older runtime: assume 128 MiB part
    budget = min(int(cap * 0.7), cap - 24 * 1024 * 1024)
    return max(budget, 16 * 1024 * 1024)


def _pick_block(dim, preferred, align):
    """Largest power-of-two tile <= preferred that divides `dim` and respects
    alignment; falls back to the full dim (full-extent blocks are always legal)."""
    if dim <= preferred:
        return dim
    t = preferred
    while t >= align and dim % t:
        t //= 2
    if t >= align and dim % t == 0:
        return t
    return dim


def _scale_tile_in(in_dim, out_dim, budget):
    """Pick the in-feature slab width for the scale pre-pass so that the
    (out_dim, ti) f32 working set (double-buffered input + temps) fits VMEM."""
    ti = 512
    while ti > 128 and 6 * out_dim * ti * 4 > budget // 2:
        ti //= 2
    return _pick_block(in_dim, ti, align=128)


# -----------------------------------------------------------------------------
# Pass 1: per-in-feature DoRA scale  (tiny, reads W exactly once)
#   scale[i] = m[i] / || W[:, i] + alpha * (A @ B).T[:, i] ||_2
# -----------------------------------------------------------------------------
def _dora_scale_kernel(w_ref, a_ref, bt_ref, m_ref, scale_ref, *, alpha):
    # lora.T slab in (out, in) layout:  (out, ti) = NT-dot(B.T (out, r), A_tile (ti, r))
    lora_t = lax.dot_general(
        bt_ref[...], a_ref[...],
        dimension_numbers=(((1,), (1,)), ((), ())),
        preferred_element_type=jnp.float32,
    )
    numer = w_ref[...].astype(jnp.float32) + alpha * lora_t          # (out, ti)
    sq = jnp.sum(numer * numer, axis=0, keepdims=True)               # (1, ti)
    scale_ref[...] = m_ref[...].astype(jnp.float32) / jnp.sqrt(sq)


def _dora_scale(W, A, B_t, m_row, *, alpha, vmem_budget):
    out_dim, in_dim = W.shape
    rank = A.shape[1]
    ti = _scale_tile_in(in_dim, out_dim, vmem_budget)

    return pl.pallas_call(
        functools.partial(_dora_scale_kernel, alpha=alpha),
        out_shape=jax.ShapeDtypeStruct((1, in_dim), jnp.float32),
        grid_spec=pltpu.PrefetchScalarGridSpec(
            num_scalar_prefetch=0,
            grid=(in_dim // ti,),
            in_specs=[
                pl.BlockSpec((out_dim, ti), lambda i: (0, i)),    # W column slab (native layout)
                pl.BlockSpec((ti, rank), lambda i: (i, 0)),       # A slab
                pl.BlockSpec((out_dim, rank), lambda i: (0, 0)),  # B.T (grid-invariant, tiny)
                pl.BlockSpec((1, ti), lambda i: (0, i)),          # m row
            ],
            out_specs=pl.BlockSpec((1, ti), lambda i: (0, i)),
        ),
        compiler_params=pltpu.CompilerParams(
            dimension_semantics=("parallel",),
            vmem_limit_bytes=vmem_budget,
        ),
    )(W, A, B_t, m_row)


# -----------------------------------------------------------------------------
# Pass 2: fused  y = x @ (scale * (W + alpha * lora.T)).T + bias
#   Merged weight is reconstructed tile-by-tile in VMEM (never written to HBM),
#   cast to compute_dtype, and consumed by an NT matmul with f32 accumulator.
# -----------------------------------------------------------------------------
def _dora_matmul_kernel(x_ref, w_ref, a_ref, bt_ref, scale_ref, bias_ref,
                        o_ref, acc_ref, *, alpha, compute_dtype):
    @pl.when(pl.program_id(2) == 0)
    def _():
        acc_ref[...] = jnp.zeros_like(acc_ref)

    # lora.T tile (bn, bk): NT-dot of B.T[j_slab] (bn, r) with A[k_slab] (bk, r)
    lora_t = lax.dot_general(
        bt_ref[...], a_ref[...],
        dimension_numbers=(((1,), (1,)), ((), ())),
        preferred_element_type=jnp.float32,
    )
    w = w_ref[...].astype(jnp.float32) + alpha * lora_t               # numerator tile (bn, bk)
    w = (scale_ref[...] * w).astype(compute_dtype)                    # scale broadcast over out

    # y_tile += x_tile @ w_tile.T   (NT matmul on the MXU, f32 accumulate)
    acc_ref[...] += lax.dot_general(
        x_ref[...], w,
        dimension_numbers=(((1,), (1,)), ((), ())),
        preferred_element_type=jnp.float32,
    )

    @pl.when(pl.program_id(2) == pl.num_programs(2) - 1)
    def _():
        o_ref[...] = (
            acc_ref[...] + bias_ref[...].astype(jnp.float32)
        ).astype(o_ref.dtype)


# -----------------------------------------------------------------------------
# Public wrapper: full DoRA-merged linear forward.
# -----------------------------------------------------------------------------
def dora_linear(x, W, A, B, m, bias, *, alpha,
                compute_dtype=jnp.bfloat16, bm=256, bn=512, bk=1024):
    batch, in_dim = x.shape
    out_dim = W.shape[0]
    rank = A.shape[1]
    out_dtype = x.dtype
    vmem_budget = _vmem_budget_bytes()

    # Tiny layout plumbing only (rank-sized / vector-sized; no full-weight copies).
    B_t = jnp.transpose(B)                            # (out, rank)
    m_row = m.reshape(1, in_dim).astype(jnp.float32)  # (1, in)
    bias2d = bias.reshape(1, out_dim)                 # (1, out)

    # Pass 1: per-in-feature scale vector (reads W once).
    scale = _dora_scale(W, A, B_t, m_row, alpha=alpha, vmem_budget=vmem_budget)

    # Pass 2: fused GEMM.  Cast activations to the MXU compute dtype.
    x_c = x.astype(compute_dtype)
    sub_align = 8 * (4 // jnp.dtype(compute_dtype).itemsize)   # 16 for bf16, 8 for f32
    bm = _pick_block(batch, bm, align=sub_align)
    bn = _pick_block(out_dim, bn, align=128)
    bk = _pick_block(in_dim, bk, align=128)
    # v7x megacore: keep >= 2 parallel tiles when only one batch tile exists.
    if batch // bm == 1 and out_dim // bn == 1 and bn % 256 == 0:
        bn //= 2

    grid = (batch // bm, out_dim // bn, in_dim // bk)

    return pl.pallas_call(
        functools.partial(_dora_matmul_kernel, alpha=alpha,
                          compute_dtype=compute_dtype),
        out_shape=jax.ShapeDtypeStruct((batch, out_dim), out_dtype),
        grid_spec=pltpu.PrefetchScalarGridSpec(
            num_scalar_prefetch=0,
            grid=grid,
            in_specs=[
                pl.BlockSpec((bm, bk), lambda i, j, k: (i, k)),    # x tile (compute dtype)
                pl.BlockSpec((bn, bk), lambda i, j, k: (j, k)),    # W tile (native (out,in) layout)
                pl.BlockSpec((bk, rank), lambda i, j, k: (k, 0)),  # A slab
                pl.BlockSpec((bn, rank), lambda i, j, k: (j, 0)),  # B.T slab
                pl.BlockSpec((1, bk), lambda i, j, k: (0, k)),     # scale row
                pl.BlockSpec((1, bn), lambda i, j, k: (0, j)),     # bias row
            ],
            out_specs=pl.BlockSpec((bm, bn), lambda i, j, k: (i, j)),
            scratch_shapes=[pltpu.VMEM((bm, bn), jnp.float32)],
        ),
        compiler_params=pltpu.CompilerParams(
            dimension_semantics=("parallel", "parallel", "arbitrary"),
            vmem_limit_bytes=vmem_budget,
        ),
    )(x_c, W, A, B_t, scale, bias2d)


def dora_linear_ref(x, W, A, B, m, bias, *, alpha):
    lora = A @ B
    numerator = W + alpha * lora.T
    denom = jnp.linalg.norm(numerator, axis=0, keepdims=True)
    new_w = m * (numerator / denom)
    return x @ new_w.T + bias[None, :]


if __name__ == "__main__":
    # Small shapes consistent with the module's forward: (batch, in_features).
    batch, in_dim, out_dim, rank = 8, 32, 32, 4
    alpha = 2.0

    key = jax.random.PRNGKey(0)
    kx, kw, kb, ka, klb = jax.random.split(key, 5)

    x = jax.random.normal(kx, (batch, in_dim), dtype=jnp.float32)
    # nn.Linear params: weight (out, in), bias (out,)
    W = jax.random.normal(kw, (out_dim, in_dim), dtype=jnp.float32) / jnp.sqrt(in_dim)
    bias = jax.random.normal(kb, (out_dim,), dtype=jnp.float32) * 0.1
    # LoRA params: A (in, rank) ~ N(0,1)/sqrt(rank); B (rank, out)
    A = jax.random.normal(ka, (in_dim, rank), dtype=jnp.float32) / jnp.sqrt(rank)
    # NOTE: module __init__ sets B = zeros; use small nonzero values so the DoRA math is exercised.
    B = jax.random.normal(klb, (rank, out_dim), dtype=jnp.float32) * 0.05
    # m = ||W||_2 over dim=0, keepdim -> (1, in)
    m = jnp.linalg.norm(W, axis=0, keepdims=True)

    ref = dora_linear_ref(x, W, A, B, m, bias, alpha=alpha)

    # Default fast path: bf16 MXU, f32 accumulator (bf16-appropriate tolerance).
    out_bf16 = dora_linear(x, W, A, B, m, bias, alpha=alpha)
    jax.block_until_ready(out_bf16)
    assert jnp.allclose(out_bf16, ref, atol=5e-2, rtol=5e-2), "bf16 path mismatch vs reference"

    # f32 path: tight tolerance against the reference.
    out_f32 = dora_linear(x, W, A, B, m, bias, alpha=alpha, compute_dtype=jnp.float32)
    jax.block_until_ready(out_f32)
    assert jnp.allclose(out_f32, ref, atol=1e-5, rtol=1e-5), "f32 path mismatch vs reference"

    print("KERNEL_OK")
</pallas_src>

<mosaic_0001>
module attributes {stable_mosaic.version = 11 : i64} {
  func.func @_dora_scale_kernel(%arg0: i32, %arg1: memref<32x32xf32, #tpu.memory_space<vmem>>, %arg2: memref<32x4xf32, #tpu.memory_space<vmem>>, %arg3: memref<32x4xf32, #tpu.memory_space<vmem>>, %arg4: memref<1x32xf32, #tpu.memory_space<vmem>>, %arg5: memref<1x32xf32, #tpu.memory_space<vmem>>) attributes {dimension_semantics = [#tpu.dimension_semantics<parallel>], iteration_bounds = array<i64: 1>, scalar_prefetch = 0 : i64, scratch_operands = 0 : i64, tpu.core_type = #tpu.core_type<tc>, window_params = [{transform_indices = @transform_0, window_bounds = array<i64: 32, 32>}, {transform_indices = @transform_1, window_bounds = array<i64: 32, 4>}, {pipeline_mode = #tpu.pipeline_mode<synchronous>, transform_indices = @transform_2, window_bounds = array<i64: 32, 4>}, {transform_indices = @transform_3, window_bounds = array<i64: 1, 32>}, {transform_indices = @transform_4, window_bounds = array<i64: 1, 32>}]} {
    %c0 = arith.constant 0 : index
    %c0_0 = arith.constant 0 : index
    %0 = vector.load %arg3[%c0, %c0_0] : memref<32x4xf32, #tpu.memory_space<vmem>>, vector<32x4xf32>
    %c0_1 = arith.constant 0 : index
    %c0_2 = arith.constant 0 : index
    %1 = vector.load %arg2[%c0_1, %c0_2] : memref<32x4xf32, #tpu.memory_space<vmem>>, vector<32x4xf32>
    %cst = arith.constant dense<0.000000e+00> : vector<32x32xf32>
    %2 = tpu.matmul %0, %1, %cst {dimension_numbers = #tpu.dot_dimension_numbers<[1], [1], [0], [0], [0, 0, 1, 0], [], []>} : vector<32x4xf32>, vector<32x4xf32>, vector<32x32xf32> -> vector<32x32xf32>
    %c0_3 = arith.constant 0 : index
    %c0_4 = arith.constant 0 : index
    %3 = vector.load %arg1[%c0_3, %c0_4] : memref<32x32xf32, #tpu.memory_space<vmem>>, vector<32x32xf32>
    %cst_5 = arith.constant 2.000000e+00 : f32
    %4 = vector.broadcast %cst_5 : f32 to vector<32x32xf32>
    %5 = arith.mulf %4, %2 : vector<32x32xf32>
    %6 = arith.addf %3, %5 : vector<32x32xf32>
    %7 = arith.mulf %6, %6 : vector<32x32xf32>
    %cst_6 = arith.constant dense<0.000000e+00> : vector<32xf32>
    %8 = vector.multi_reduction <add>, %7, %cst_6 [0] : vector<32x32xf32> to vector<32xf32>
    %9 = vector.shape_cast %8 : vector<32xf32> to vector<1x32xf32>
    %c0_7 = arith.constant 0 : index
    %c0_8 = arith.constant 0 : index
    %10 = vector.load %arg4[%c0_7, %c0_8] : memref<1x32xf32, #tpu.memory_space<vmem>>, vector<1x32xf32>
    %11 = math.sqrt %9 : vector<1x32xf32>
    %12 = arith.divf %10, %11 : vector<1x32xf32>
    %c0_9 = arith.constant 0 : index
    %c0_10 = arith.constant 0 : index
    %13 = vector.load %arg5[%c0_9, %c0_10] : memref<1x32xf32, #tpu.memory_space<vmem>>, vector<1x32xf32>
    tpu.vector_store %arg5[%c0_9, %c0_10], %12 {strides = array<i32>} : memref<1x32xf32, #tpu.memory_space<vmem>>, vector<1x32xf32>,
    return
  }
  func.func @transform_0(%arg0: i32) -> (i32, i32) {
    %c0_i32 = arith.constant 0 : i32
    %c0_i32_0 = arith.constant 0 : i32
    return %c0_i32, %arg0 : i32, i32
  }
  func.func @transform_1(%arg0: i32) -> (i32, i32) {
    %c0_i32 = arith.constant 0 : i32
    %c0_i32_0 = arith.constant 0 : i32
    return %arg0, %c0_i32 : i32, i32
  }
  func.func @transform_2(%arg0: i32) -> (i32, i32) {
    %c0_i32 = arith.constant 0 : i32
    %c0_i32_0 = arith.constant 0 : i32
    %c0_i32_1 = arith.constant 0 : i32
    return %c0_i32, %c0_i32_0 : i32, i32
  }
  func.func @transform_3(%arg0: i32) -> (i32, i32) {
    %c0_i32 = arith.constant 0 : i32
    %c0_i32_0 = arith.constant 0 : i32
    return %c0_i32, %arg0 : i32, i32
  }
  func.func @transform_4(%arg0: i32) -> (i32, i32) {
    %c0_i32 = arith.constant 0 : i32
    %c0_i32_0 = arith.constant 0 : i32
    return %c0_i32, %arg0 : i32, i32
  }
}

</mosaic_0001>

<llo_original>
// kernel: tpu_custom_call.1
$region0: #{tpu_custom_call.1}
  #allocation0 [shape = 'u32[]', space=smem, size = 0x4, offset = 0x4, fixed_abs, tag = 'smem constant byte address 0x4 - core index']
  #allocation1 [shape = 'u32[72,128]{1,0:T(1,128)}', space=vmem, size = 0x9000, scoped, tag = 'internal scratch']
  %s0 = inlined_call_operand.vmem [shape: f32[32,32], index: 0, kind: input, shape index: {}]
  %s1 = inlined_call_operand.vmem [shape: f32[32,4], index: 1, kind: input, shape index: {}]
  %s2 = inlined_call_operand.vmem [shape: f32[32,4], index: 2, kind: input, shape index: {}]
  %s3 = inlined_call_operand.vmem [shape: f32[1,32], index: 3, kind: input, shape index: {}]
  %s4 = inlined_call_operand.hbm [shape: f32[1,32], index: 4, kind: output, shape index: {}]
  %s5 = sld [smem:[#allocation0]]
  $region26: #{tpu_custom_call.1} parent=0
    _
  %s7 = ssub.s32 1, %s5
  %s8 = scalar_select 0, %s7, %s5
  $region1: #{tpu_custom_call.1} parent=0
    #allocation2 [shape = 'u8[512]{0}', space=vmem, size = 0x400, scoped, tag = 'output window, operand 0, single buffered']
    #allocation3 [shape = 's32[1]{0}', space=sflag, size = 0x4, scoped, tag = 'scoped memory for tpu_custom_call.1']
    %9 = vsyncpa [#allocation3], 0
    // Predicated region
    $region2: #{tpu_custom_call.1} parent=1 // pred_check
      _
    $region3: #{tpu_custom_call.1} parent=1 // pred_check_branch
      %11 = sbr.rel (0) target = $region5
    $region4: #{tpu_custom_call.1} parent=1 // pred_region
      _
    $region5: #{tpu_custom_call.1} parent=1 // pred_fallthru
      _
    // Predicated region
    $region6: #{tpu_custom_call.1} parent=1 // pred_check
      _
    $region7: #{tpu_custom_call.1} parent=1 // pred_check_branch
      %13 = sbr.rel (0) target = $region9
    $region8: #{tpu_custom_call.1} parent=1 // pred_region
      _
    $region9: #{tpu_custom_call.1} parent=1 // pred_fallthru
      _
    // Predicated region
    $region10: #{tpu_custom_call.1} parent=1 // pred_check
      _
    $region11: #{tpu_custom_call.1} parent=1 // pred_check_branch
      %15 = sbr.rel (0) target = $region13
    $region12: #{tpu_custom_call.1} parent=1 // pred_region
      _
    $region13: #{tpu_custom_call.1} parent=1 // pred_fallthru
      _
    // Predicated region
    $region14: #{tpu_custom_call.1} parent=1 // pred_check
      _
    $region15: #{tpu_custom_call.1} parent=1 // pred_check_branch
      %17 = sbr.rel (0) target = $region17
    $region16: #{tpu_custom_call.1} parent=1 // pred_region
      _
    $region17: #{tpu_custom_call.1} parent=1 // pred_fallthru
      _
    %v18 = vld [vmem:[%s2] sm:$0xff]
    %v19 = vld [vmem:[%s2 + $0x8] sm:$0xff]
    %v20 = vld [vmem:[%s2 + $0x10] sm:$0xff]
    %v21 = vld [vmem:[%s2 + $0x18] sm:$0xff]
    %v22 = vld [vmem:[%s1] sm:$0xff]
    %v23 = vld [vmem:[%s1 + $0x8] sm:$0xff]
    %v24 = vld [vmem:[%s1 + $0x10] sm:$0xff]
    %v25 = vld [vmem:[%s1 + $0x18] sm:$0xff]
    %vm26 = vcmask 31744
    %v28 = vsel %vm26, %v18, 0
    %v31 = vsel %vm26, %v19, 0
    %v34 = vsel %vm26, %v20, 0
    %v37 = vsel %vm26, %v21, 0
    %v40 = vsel %vm26, %v22, 0
    %v43 = vsel %vm26, %v23, 0
    %v46 = vsel %vm26, %v24, 0
    %v49 = vsel %vm26, %v25, 0
    %51 = vmatpush.xpose.msra.mxu0 0.0
    %52 = vmatpush.xpose.msra.mxu0 0.0
    %53 = vmatpush.xpose.msra.mxu0 0.0
    %54 = vmatpush.xpose.msra.mxu0 0.0
    %55 = vmatpush.xpose.msra.mxu0 0.0
    %56 = vmatpush.xpose.msra.mxu0 0.0
    %57 = vmatpush.xpose.msra.mxu0 0.0
    %58 = vmatpush.xpose.msra.mxu0 0.0
    %59 = vmatpush.xpose.msra.mxu0 0.0
    %60 = vmatpush.xpose.msra.mxu0 0.0
    %61 = vmatpush.xpose.msra.mxu0 0.0
    %62 = vmatpush.xpose.msra.mxu0 0.0
    %63 = vmatpush.xpose.msra.mxu0 %v49
    %64 = vmatpush.xpose.msra.mxu0 %v46
    %65 = vmatpush.xpose.msra.mxu0 %v43
    %66 = vmatpush.xpose.msra.mxu0 %v40
    %67 = vmatmul.f32.gmra.mxu0 %v28
    %v68 = vpop.f32.mrf.mxu0
    %v69 = vadd.f32 0.0, %v68
    %70 = vmatmul.f32.gmra.mxu0 %v31
    %v71 = vpop.f32.mrf.mxu0
    %v72 = vadd.f32 0.0, %v71
    %73 = vmatmul.f32.gmra.mxu0 %v34
    %v74 = vpop.f32.mrf.mxu0
    %v75 = vadd.f32 0.0, %v74
    %76 = vmatmul.f32.gmra.mxu0 %v37
    %v77 = vpop.f32.mrf.mxu0
    %v78 = vadd.f32 0.0, %v77
    %79 = vdwg.mxu0
    %v80 = vld [vmem:[%s0] sm:$0xff]
    %v81 = vld [vmem:[%s0 + $0x8] sm:$0xff]
    %v82 = vld [vmem:[%s0 + $0x10] sm:$0xff]
    %v83 = vld [vmem:[%s0 + $0x18] sm:$0xff]
    %v84 = vmul.f32 %v69, 2.0
    %v85 = vmul.f32 %v72, 2.0
    %v86 = vmul.f32 %v75, 2.0
    %v87 = vmul.f32 %v78, 2.0
    %v88 = vadd.f32 %v80, %v84
    %v89 = vadd.f32 %v81, %v85
    %v90 = vadd.f32 %v82, %v86
    %v91 = vadd.f32 %v83, %v87
    %v92 = vmul.f32 %v88, %v88
    %v93 = vmul.f32 %v89, %v89
    %v94 = vmul.f32 %v90, %v90
    %v95 = vmul.f32 %v91, %v91
    %vm96 = vcmask 261120
    %v97 = vsel %vm96, %v92, 0.0
    %v98 = vsel %vm96, %v93, 0.0
    %v99 = vadd.f32 %v97, %v98
    %v100 = vsel %vm96, %v94, 0.0
    %v101 = vadd.f32 %v99, %v100
    %v102 = vsel %vm96, %v95, 0.0
    %v103 = vadd.f32 %v101, %v102
    %v104 = vrot.slane %v103, 4
    %v105 = vadd.f32 %v103, %v104
    %v106 = vrot.slane %v105, 2
    %v107 = vadd.f32 %v105, %v106
    %v108 = vrot.slane %v107, 1
    %v109 = vadd.f32 %v107, %v108
    %v110 = vld [vmem:[%s3] sm:$0x1]
    %v111 = vrsqrt.pop %v109
    %v112 = vmul.f32 %v111, %v109
    %v113 = vmul.f32 %v112, %v111
    %v114 = vmul.f32 0.5, %v113
    %v115 = vsub.f32 1.5, %v114
    %v116 = vmul.f32 %v111, %v115
    %v117 = vmul.f32 %v109, %v116
    %vm118 = vcmp.eq.f32.partialorder %v109, inf
    %v119 = vsel %vm118, %v109, %v117
    %vm120 = vcmp.eq.f32.partialorder %v109, 0.0
    %v121 = vand.u32 %v109, 2147483648
    %v122 = vsel %vm120, %v121, %v119
    %v123 = vrcp.pop %v122
    %v124 = vmul.f32 %v122, %v123
    %v125 = vsub.f32 1.0, %v124
    %v126 = vmul.f32 %v123, %v125
    %v127 = vadd.f32 %v123, %v126
    %vm128 = vweird.f32 %v122
    %vm129 = vweird.f32 %v123
    %vm130 = vmor %vm128, %vm129
    %v131 = vsel %vm130, %v123, %v127
    %v132 = vand.u32 2147483647, %v122
    %vm133 = vcmp.eq.f32.partialorder %v132, 8.507059e+37
    %v134 = vand.u32 %v122, 2147483648
    %v135 = vor.u32 1.1754944e-38, %v134
    %v136 = vsel %vm133, %v135, %v131
    %v137 = vmul.f32 %v110, %v136
    %vm138 = vcmask 253952
    %139 = vst.msk [vmem:[#allocation2] sm:$0x1] %vm138, %v137
    // Predicated region
    $region18: #{tpu_custom_call.1} parent=1 // pred_check
      _
    $region19: #{tpu_custom_call.1} parent=1 // pred_check_branch
      %141 = sbr.rel (0) target = $region21
    $region20: #{tpu_custom_call.1} parent=1 // pred_region
      %143 = vsyncadd [#allocation3], 0
      %s145 = sshll.u32 [#allocation2], 4
      %s146 = int_to_ptr.vmem [resolvable:$true] %s145
      %s147 = sshll.u32 %s4, 4
      %s148 = int_to_ptr.hbm [resolvable:$true] %s147
      %150 = dma.vmem_to_hbm [thread:$0]  %s146, 16, %s148, [#allocation3]
    $region21: #{tpu_custom_call.1} parent=1 // pred_fallthru
      _
    // Predicated region
    $region22: #{tpu_custom_call.1} parent=1 // pred_check
      _
    $region23: #{tpu_custom_call.1} parent=1 // pred_check_branch
      %152 = sbr.rel (0) target = $region25
    $region24: #{tpu_custom_call.1} parent=1 // pred_region
      %154 = dma.done [#allocation3], 16
    $region25: #{tpu_custom_call.1} parent=1 // pred_fallthru
      _
    %155 = vsyncpa [#allocation3], 1

</llo_original>
